<compile_context>
chip_gen: v7x
topology: tpu7x:2x2x1
jax: 0.10.0
libtpu: 0.0.40
codegen_flags: <defaults>
</compile_context>

<pallas_src>
import jax
import jax.numpy as jnp
from jax.experimental import pallas as pl
from jax.experimental.pallas import tpu as pltpu

FEAT_LEN = 3     # len(['lat', 'lon', 'CT'])
CONV_OUT = 32
HID = 256
ENC_DIM = 32
REG_HID = 64
HEAD_N = 128     # fused head width: 32 (enc) + 64 (regression hidden) + 32 pad
EPS = 1e-5


def _round_up(n, m):
    return ((n + m - 1) // m) * m


# --------------------------------------------------------------------------- kernel
def _cnn_ae_kernel(
    x_ref,        # (4, BB)   f32 : rows = [lat, lon, CT, ones]
    w64_ref,      # (64, 4)   f32 : conv (both pooled taps) + BN1 folded, bias column
    w1_ref,       # (256, 32) bf16: fc1
    wh_ref,       # (128, 256)bf16: fused head (BN2∘fc2 rows 0..31, rg1∘BN2∘fc2 rows 32..95)
    aux_ref,      # (256, 4)  f32 : col0=b1, col1=b_head, col2=rg2, col3[0]=rg2b
    enc_ref,      # (32, BB)  f32
    pred_ref,     # (1, BB)   f32
):
    x = x_ref[...]                                                      # (4, BB) f32

    # Conv1d(1->32, k=3, pad=1) + BN1 + bias for the two output positions consumed
    # by MaxPool1d(2), fused into a single (64, 4) @ (4, BB) matmul (f32, K is tiny).
    y = jnp.dot(w64_ref[...], x, preferred_element_type=jnp.float32)   # (64, BB)
    y = jnp.maximum(y, 0.0)                                             # ReLU
    pooled = jnp.maximum(y[:CONV_OUT, :], y[CONV_OUT:, :])              # MaxPool1d(2) -> (32, BB)

    # Linear(32->256) + ReLU (BN2 is folded forward into the head weights).
    h = jnp.dot(w1_ref[...], pooled.astype(jnp.bfloat16),
                preferred_element_type=jnp.float32) + aux_ref[:, 0:1]
    h = jnp.maximum(h, 0.0)

    # Fused head: one N=128 MXU pass over h.
    head = jnp.dot(wh_ref[...], h.astype(jnp.bfloat16),
                   preferred_element_type=jnp.float32) + aux_ref[:HEAD_N, 1:2]  # (128, BB)

    # Encoder output (rows 0..31), lane-dense store.
    enc_ref[...] = head[:ENC_DIM, :]

    # Regression head: ReLU on rows 32..95, then the 64->1 projection as a VPU
    # multiply + sublane reduce (avoids an M=1 MXU matmul), plus the scalar bias.
    r = jnp.maximum(head[ENC_DIM:ENC_DIM + REG_HID, :], 0.0)            # (64, BB)
    pred_ref[...] = (jnp.sum(r * aux_ref[:REG_HID, 2:3], axis=0, keepdims=True)
                     + aux_ref[0:1, 3:4])


# --------------------------------------------------------------------------- wrapper
def supervised_cnn_autoencoder(x_ncl, kparams, block_b=2048):
    """Fused forward pass, tiled over batch with batch mapped to lanes.

    block_b: batch tile (multiple of 128).  It is capped so the grid keeps >= 2
    steps when the batch allows it (megacore sharding on v7x).  Per-step VMEM at
    block_b=2048 is ~7 MiB, under the v5e 16 MiB default scoped limit."""
    B, C, L = x_ncl.shape
    assert C == 1 and L == FEAT_LEN

    bp128 = _round_up(B, 128)
    # largest multiple of 128 that still leaves >= 2 grid steps (when B allows)
    half = max(128, (bp128 // 256) * 128)
    block_b = max(128, min(_round_up(block_b, 128), half))
    Bp = _round_up(B, block_b)

    # Input as a (4, Bp) lane-dense slab: 3 feature rows + a ones row (the ones row
    # carries the folded conv+BN1 bias).  Pad value 1.0 only lands in the ones row
    # and in batch columns >= B, which are sliced away after the kernel.
    x2 = x_ncl[:, 0, :].astype(jnp.float32)                              # (B, 3)
    x_aug = jnp.pad(x2, ((0, Bp - B), (0, 1)), constant_values=1.0).T    # (4, Bp)

    w64a, w1, w_head, aux = (kparams["w64a"], kparams["w1"],
                             kparams["w_head"], kparams["aux"])

    in_specs = [
        pl.BlockSpec((4, block_b), lambda i: (0, i)),
        pl.BlockSpec(w64a.shape, lambda i: (0, 0)),
        pl.BlockSpec(w1.shape, lambda i: (0, 0)),
        pl.BlockSpec(w_head.shape, lambda i: (0, 0)),
        pl.BlockSpec(aux.shape, lambda i: (0, 0)),
    ]
    out_specs = (
        pl.BlockSpec((ENC_DIM, block_b), lambda i: (0, i)),
        pl.BlockSpec((1, block_b), lambda i: (0, i)),
    )
    out_shape = (
        jax.ShapeDtypeStruct((ENC_DIM, Bp), jnp.float32),
        jax.ShapeDtypeStruct((1, Bp), jnp.float32),
    )

    enc_t, pred_t = pl.pallas_call(
        _cnn_ae_kernel,
        grid=(Bp // block_b,),
        in_specs=in_specs,
        out_specs=out_specs,
        out_shape=out_shape,
        compiler_params=pltpu.CompilerParams(
            dimension_semantics=("parallel",),
            vmem_limit_bytes=32 * 1024 * 1024,
        ),
    )(x_aug, w64a, w1, w_head, aux)

    # Back to PyTorch layout (tiny wrapper transposes over 32*B / 1*B floats).
    return enc_t[:, :B].T, pred_t[:, :B].T


# --------------------------------------------------------------------------- params
def init_params(key):
    """Raw parameters in PyTorch layout, mirroring the module's _init_weights and
    freshly-initialized BatchNorm running stats (eval mode)."""
    ks = jax.random.split(key, 10)

    def kaiming_fan_out(k, shape, fan_out):
        return jax.random.normal(k, shape, jnp.float32) * jnp.sqrt(2.0 / fan_out)

    def xavier(k, fan_out, fan_in):
        std = jnp.sqrt(2.0 / (fan_in + fan_out))
        return jax.random.normal(k, (fan_out, fan_in), jnp.float32) * std

    def bias(k, fan_in, n):
        bound = 1.0 / jnp.sqrt(fan_in)
        return jax.random.uniform(k, (n,), jnp.float32, -bound, bound)

    ones = lambda n: jnp.ones((n,), jnp.float32)
    zeros = lambda n: jnp.zeros((n,), jnp.float32)

    return dict(
        conv_w=kaiming_fan_out(ks[0], (CONV_OUT, 1, FEAT_LEN), CONV_OUT * FEAT_LEN),
        conv_b=bias(ks[1], 1 * FEAT_LEN, CONV_OUT),
        bn1_g=ones(CONV_OUT), bn1_b=zeros(CONV_OUT),
        bn1_m=zeros(CONV_OUT), bn1_v=ones(CONV_OUT),
        fc1_w=xavier(ks[2], HID, CONV_OUT * (FEAT_LEN // 2)),   # (256, 32) torch layout
        fc1_b=bias(ks[3], CONV_OUT * (FEAT_LEN // 2), HID),
        bn2_g=ones(HID), bn2_b=zeros(HID),
        bn2_m=zeros(HID), bn2_v=ones(HID),
        fc2_w=xavier(ks[4], ENC_DIM, HID),                      # (32, 256)
        fc2_b=bias(ks[5], HID, ENC_DIM),
        rg1_w=xavier(ks[6], REG_HID, ENC_DIM),                  # (64, 32)
        rg1_b=bias(ks[7], ENC_DIM, REG_HID),
        rg2_w=xavier(ks[8], 1, REG_HID),                        # (1, 64)
        rg2_b=bias(ks[9], REG_HID, 1),
    )


def fold_params(p):
    """Constant-fold eval-mode BatchNorms, merge the two pooled conv taps (plus the
    bias as a 4th tap against the ones row), compose fc2->rg1, fuse the two head
    matmuls into one (128, 256) weight, and pack all small vectors into one operand."""
    # BN1 into the conv.
    s1 = p["bn1_g"] / jnp.sqrt(p["bn1_v"] + EPS)              # (32,)
    t1 = p["bn1_b"] - p["bn1_m"] * s1
    cw = p["conv_w"][:, 0, :] * s1[:, None]                   # (32, 3): (out, tap)
    cb = (p["conv_b"] * s1 + t1)[:, None]                     # (32, 1)

    # Two conv output positions consumed by MaxPool1d(2):
    #   pos 0 (left zero-pad): taps [w1, w2, 0];  pos 1 (full window): [w0, w1, w2]
    # plus the folded bias as a 4th column multiplying the ones row of x.
    zero_col = jnp.zeros((CONV_OUT, 1), jnp.float32)
    w_pos0 = jnp.concatenate([cw[:, 1:3], zero_col, cb], axis=1)          # (32, 4)
    w_pos1 = jnp.concatenate([cw, cb], axis=1)                            # (32, 4)
    w64a = jnp.concatenate([w_pos0, w_pos1], axis=0)                      # (64, 4), f32

    # fc1 already (out, in) = (256, 32) for the transposed dataflow.
    w1 = p["fc1_w"].astype(jnp.bfloat16)
    b1 = p["fc1_b"]

    # BN2 into fc2, then compose with the first regression Linear; fuse into one
    # (128, 256) head weight (rows 96..127 are zero padding).
    s2 = p["bn2_g"] / jnp.sqrt(p["bn2_v"] + EPS)              # (256,)
    t2 = p["bn2_b"] - p["bn2_m"] * s2
    w2p = p["fc2_w"] * s2[None, :]                            # (32, 256)
    b2p = p["fc2_w"] @ t2 + p["fc2_b"]                        # (32,)
    wcp = p["rg1_w"] @ w2p                                    # (64, 256)
    bcp = p["rg1_w"] @ b2p + p["rg1_b"]                       # (64,)
    pad_rows = HEAD_N - ENC_DIM - REG_HID
    w_head = jnp.concatenate(
        [w2p, wcp, jnp.zeros((pad_rows, HID), jnp.float32)], axis=0
    ).astype(jnp.bfloat16)                                    # (128, 256)
    b_head = jnp.concatenate([b2p, bcp, jnp.zeros((pad_rows,), jnp.float32)])  # (128,)

    # All remaining small vectors packed into a single f32 operand.
    aux = jnp.zeros((HID, 4), jnp.float32)
    aux = aux.at[:, 0].set(b1)
    aux = aux.at[:HEAD_N, 1].set(b_head)
    aux = aux.at[:REG_HID, 2].set(p["rg2_w"][0])
    aux = aux.at[0, 3].set(p["rg2_b"][0])

    return dict(w64a=w64a, w1=w1, w_head=w_head, aux=aux)


# --------------------------------------------------------------------------- reference
def reference_forward(x_ncl, p):
    """Independent all-f32 reference following the PyTorch op sequence in eval mode:
    explicit padded Conv1d, BatchNorm with running stats, MaxPool1d (floor), Linears."""
    x = x_ncl[:, 0, :].astype(jnp.float32)                    # (B, 3)
    xpad = jnp.pad(x, ((0, 0), (1, 1)))                       # padding=1
    w = p["conv_w"][:, 0, :]                                  # (32, 3)
    y = jnp.stack([xpad[:, i:i + FEAT_LEN] @ w.T + p["conv_b"]
                   for i in range(FEAT_LEN)], axis=2)         # (B, 32, 3)
    y = ((y - p["bn1_m"][None, :, None]) / jnp.sqrt(p["bn1_v"][None, :, None] + EPS)
         * p["bn1_g"][None, :, None] + p["bn1_b"][None, :, None])
    y = jnp.maximum(y, 0.0)
    pooled = jnp.maximum(y[:, :, 0], y[:, :, 1])              # MaxPool1d(2): 3 -> 1; Flatten
    h = jnp.maximum(pooled @ p["fc1_w"].T + p["fc1_b"], 0.0)
    h = (h - p["bn2_m"]) / jnp.sqrt(p["bn2_v"] + EPS) * p["bn2_g"] + p["bn2_b"]
    enc = h @ p["fc2_w"].T + p["fc2_b"]
    r = jnp.maximum(enc @ p["rg1_w"].T + p["rg1_b"], 0.0)
    pred = r @ p["rg2_w"].T + p["rg2_b"]
    return enc, pred


if __name__ == "__main__":
    key = jax.random.PRNGKey(0)
    k_x, k_p = jax.random.split(key)

    B = 256
    x = jax.random.normal(k_x, (B, 1, FEAT_LEN), jnp.float32)  # NCL: (batch, channels=1, 3)

    raw_params = init_params(k_p)
    kernel_params = fold_params(raw_params)

    # At B=256 the wrapper caps block_b at 128 -> 2 grid steps (one per v7x TC);
    # at production batch sizes the default 2048 tile amortizes per-step overhead.
    encoded, pred = supervised_cnn_autoencoder(x, kernel_params)
    jax.block_until_ready((encoded, pred))

    ref_enc, ref_pred = reference_forward(x, raw_params)
    assert encoded.shape == (B, ENC_DIM) and pred.shape == (B, 1)
    # Tolerance covers bf16 fc1/head operands (f32 accumulation) and the extra bf16
    # rounding on the composed fc2->rg1 regression path vs the all-f32 reference.
    assert jnp.allclose(encoded, ref_enc, rtol=1e-2, atol=2e-2), float(
        jnp.max(jnp.abs(encoded - ref_enc)))
    assert jnp.allclose(pred, ref_pred, rtol=1e-2, atol=2e-2), float(
        jnp.max(jnp.abs(pred - ref_pred)))

    print("KERNEL_OK")
</pallas_src>

<mosaic_0001>
module attributes {stable_mosaic.version = 11 : i64} {
  func.func @_cnn_ae_kernel(%arg0: i32, %arg1: memref<4x128xf32, #tpu.memory_space<vmem>>, %arg2: memref<64x4xf32, #tpu.memory_space<vmem>>, %arg3: memref<256x32xbf16, #tpu.memory_space<vmem>>, %arg4: memref<128x256xbf16, #tpu.memory_space<vmem>>, %arg5: memref<256x4xf32, #tpu.memory_space<vmem>>, %arg6: memref<32x128xf32, #tpu.memory_space<vmem>>, %arg7: memref<1x128xf32, #tpu.memory_space<vmem>>) attributes {dimension_semantics = [#tpu.dimension_semantics<parallel>], iteration_bounds = array<i64: 2>, scalar_prefetch = 0 : i64, scratch_operands = 0 : i64, tpu.core_type = #tpu.core_type<tc>, window_params = [{transform_indices = @transform_0, window_bounds = array<i64: 4, 128>}, {pipeline_mode = #tpu.pipeline_mode<synchronous>, transform_indices = @transform_1, window_bounds = array<i64: 64, 4>}, {pipeline_mode = #tpu.pipeline_mode<synchronous>, transform_indices = @transform_2, window_bounds = array<i64: 256, 32>}, {pipeline_mode = #tpu.pipeline_mode<synchronous>, transform_indices = @transform_3, window_bounds = array<i64: 128, 256>}, {pipeline_mode = #tpu.pipeline_mode<synchronous>, transform_indices = @transform_4, window_bounds = array<i64: 256, 4>}, {transform_indices = @transform_5, window_bounds = array<i64: 32, 128>}, {transform_indices = @transform_6, window_bounds = array<i64: 1, 128>}]} {
    %c0 = arith.constant 0 : index
    %c0_0 = arith.constant 0 : index
    %0 = vector.load %arg1[%c0, %c0_0] : memref<4x128xf32, #tpu.memory_space<vmem>>, vector<4x128xf32>
    %c0_1 = arith.constant 0 : index
    %c0_2 = arith.constant 0 : index
    %1 = vector.load %arg2[%c0_1, %c0_2] : memref<64x4xf32, #tpu.memory_space<vmem>>, vector<64x4xf32>
    %cst = arith.constant dense<0.000000e+00> : vector<64x128xf32>
    %2 = tpu.matmul %1, %0, %cst {dimension_numbers = #tpu.dot_dimension_numbers<[1], [0], [0], [1], [0, 0, 1, 1], [], []>} : vector<64x4xf32>, vector<4x128xf32>, vector<64x128xf32> -> vector<64x128xf32>
    %cst_3 = arith.constant 0.000000e+00 : f32
    %3 = vector.broadcast %cst_3 : f32 to vector<64x128xf32>
    %4 = arith.maximumf %2, %3 : vector<64x128xf32>
    %5 = vector.extract_strided_slice %4 {offsets = [0, 0], sizes = [32, 128], strides = [1, 1]} : vector<64x128xf32> to vector<32x128xf32>
    %6 = vector.extract_strided_slice %4 {offsets = [32, 0], sizes = [32, 128], strides = [1, 1]} : vector<64x128xf32> to vector<32x128xf32>
    %7 = arith.maximumf %5, %6 : vector<32x128xf32>
    %c0_4 = arith.constant 0 : index
    %c0_5 = arith.constant 0 : index
    %8 = vector.load %arg3[%c0_4, %c0_5] : memref<256x32xbf16, #tpu.memory_space<vmem>>, vector<256x32xbf16>
    %9 = arith.truncf %7 : vector<32x128xf32> to vector<32x128xbf16>
    %cst_6 = arith.constant dense<0.000000e+00> : vector<256x128xf32>
    %10 = tpu.matmul %8, %9, %cst_6 {dimension_numbers = #tpu.dot_dimension_numbers<[1], [0], [0], [1], [0, 0, 1, 1], [], []>} : vector<256x32xbf16>, vector<32x128xbf16>, vector<256x128xf32> -> vector<256x128xf32>
    %c0_7 = arith.constant 0 : index
    %c0_8 = arith.constant 0 : index
    %11 = vector.load %arg5[%c0_7, %c0_8] : memref<256x4xf32, #tpu.memory_space<vmem>>, vector<256x1xf32>
    %12 = vector.broadcast %11 : vector<256x1xf32> to vector<256x128xf32>
    %13 = arith.addf %10, %12 : vector<256x128xf32>
    %cst_9 = arith.constant 0.000000e+00 : f32
    %14 = vector.broadcast %cst_9 : f32 to vector<256x128xf32>
    %15 = arith.maximumf %13, %14 : vector<256x128xf32>
    %c0_10 = arith.constant 0 : index
    %c0_11 = arith.constant 0 : index
    %16 = vector.load %arg4[%c0_10, %c0_11] : memref<128x256xbf16, #tpu.memory_space<vmem>>, vector<128x256xbf16>
    %17 = arith.truncf %15 : vector<256x128xf32> to vector<256x128xbf16>
    %cst_12 = arith.constant dense<0.000000e+00> : vector<128x128xf32>
    %18 = tpu.matmul %16, %17, %cst_12 {dimension_numbers = #tpu.dot_dimension_numbers<[1], [0], [0], [1], [0, 0, 1, 1], [], []>} : vector<128x256xbf16>, vector<256x128xbf16>, vector<128x128xf32> -> vector<128x128xf32>
    %c0_13 = arith.constant 0 : index
    %c1 = arith.constant 1 : index
    %19 = vector.load %arg5[%c0_13, %c1] : memref<256x4xf32, #tpu.memory_space<vmem>>, vector<128x1xf32>
    %20 = vector.broadcast %19 : vector<128x1xf32> to vector<128x128xf32>
    %21 = arith.addf %18, %20 : vector<128x128xf32>
    %22 = vector.extract_strided_slice %21 {offsets = [0, 0], sizes = [32, 128], strides = [1, 1]} : vector<128x128xf32> to vector<32x128xf32>
    %c0_14 = arith.constant 0 : index
    %c0_15 = arith.constant 0 : index
    %23 = vector.load %arg6[%c0_14, %c0_15] : memref<32x128xf32, #tpu.memory_space<vmem>>, vector<32x128xf32>
    tpu.vector_store %arg6[%c0_14, %c0_15], %22 {strides = array<i32>} : memref<32x128xf32, #tpu.memory_space<vmem>>, vector<32x128xf32>,
    %24 = vector.extract_strided_slice %21 {offsets = [32, 0], sizes = [64, 128], strides = [1, 1]} : vector<128x128xf32> to vector<64x128xf32>
    %cst_16 = arith.constant 0.000000e+00 : f32
    %25 = vector.broadcast %cst_16 : f32 to vector<64x128xf32>
    %26 = arith.maximumf %24, %25 : vector<64x128xf32>
    %c0_17 = arith.constant 0 : index
    %c2 = arith.constant 2 : index
    %27 = vector.load %arg5[%c0_17, %c2] : memref<256x4xf32, #tpu.memory_space<vmem>>, vector<64x1xf32>
    %28 = vector.broadcast %27 : vector<64x1xf32> to vector<64x128xf32>
    %29 = arith.mulf %26, %28 : vector<64x128xf32>
    %cst_18 = arith.constant dense<0.000000e+00> : vector<128xf32>
    %30 = vector.multi_reduction <add>, %29, %cst_18 [0] : vector<64x128xf32> to vector<128xf32>
    %31 = vector.shape_cast %30 : vector<128xf32> to vector<1x128xf32>
    %c0_19 = arith.constant 0 : index
    %c3 = arith.constant 3 : index
    %32 = vector.load %arg5[%c0_19, %c3] : memref<256x4xf32, #tpu.memory_space<vmem>>, vector<1x1xf32>
    %33 = vector.broadcast %32 : vector<1x1xf32> to vector<1x128xf32>
    %34 = arith.addf %31, %33 : vector<1x128xf32>
    %c0_20 = arith.constant 0 : index
    %c0_21 = arith.constant 0 : index
    %35 = vector.load %arg7[%c0_20, %c0_21] : memref<1x128xf32, #tpu.memory_space<vmem>>, vector<1x128xf32>
    tpu.vector_store %arg7[%c0_20, %c0_21], %34 {strides = array<i32>} : memref<1x128xf32, #tpu.memory_space<vmem>>, vector<1x128xf32>,
    return
  }
  func.func @transform_0(%arg0: i32) -> (i32, i32) {
    %c0_i32 = arith.constant 0 : i32
    %c0_i32_0 = arith.constant 0 : i32
    return %c0_i32, %arg0 : i32, i32
  }
  func.func @transform_1(%arg0: i32) -> (i32, i32) {
    %c0_i32 = arith.constant 0 : i32
    %c0_i32_0 = arith.constant 0 : i32
    %c0_i32_1 = arith.constant 0 : i32
    return %c0_i32, %c0_i32_0 : i32, i32
  }
  func.func @transform_2(%arg0: i32) -> (i32, i32) {
    %c0_i32 = arith.constant 0 : i32
    %c0_i32_0 = arith.constant 0 : i32
    %c0_i32_1 = arith.constant 0 : i32
    return %c0_i32, %c0_i32_0 : i32, i32
  }
  func.func @transform_3(%arg0: i32) -> (i32, i32) {
    %c0_i32 = arith.constant 0 : i32
    %c0_i32_0 = arith.constant 0 : i32
    %c0_i32_1 = arith.constant 0 : i32
    return %c0_i32, %c0_i32_0 : i32, i32
  }
  func.func @transform_4(%arg0: i32) -> (i32, i32) {
    %c0_i32 = arith.constant 0 : i32
    %c0_i32_0 = arith.constant 0 : i32
    %c0_i32_1 = arith.constant 0 : i32
    return %c0_i32, %c0_i32_0 : i32, i32
  }
  func.func @transform_5(%arg0: i32) -> (i32, i32) {
    %c0_i32 = arith.constant 0 : i32
    %c0_i32_0 = arith.constant 0 : i32
    return %c0_i32, %arg0 : i32, i32
  }
  func.func @transform_6(%arg0: i32) -> (i32, i32) {
    %c0_i32 = arith.constant 0 : i32
    %c0_i32_0 = arith.constant 0 : i32
    return %c0_i32, %arg0 : i32, i32
  }
}

</mosaic_0001>

<llo_original>
// kernel: tpu_custom_call.1
$region0: #{tpu_custom_call.1}
  #allocation0 [shape = 'u32[]', space=smem, size = 0x4, offset = 0x4, fixed_abs, tag = 'smem constant byte address 0x4 - core index']
  #allocation1 [shape = 'u32[144,128]{1,0:T(1,128)}', space=vmem, size = 0x12000, scoped, tag = 'internal scratch']
  %s0 = inlined_call_operand.vmem [shape: f32[4,256], index: 0, kind: input, shape index: {}]
  %s1 = inlined_call_operand.vmem [shape: f32[64,4], index: 1, kind: input, shape index: {}]
  %s2 = inlined_call_operand.vmem [shape: bf16[256,32], index: 2, kind: input, shape index: {}]
  %s3 = inlined_call_operand.vmem [shape: bf16[128,256], index: 3, kind: input, shape index: {}]
  %s4 = inlined_call_operand.vmem [shape: f32[256,4], index: 4, kind: input, shape index: {}]
  %s5 = inlined_call_operand.hbm [shape: f32[32,256], index: 5, kind: output, shape index: {0}]
  %s6 = inlined_call_operand.hbm [shape: f32[1,256], index: 6, kind: output, shape index: {1}]
  %7 = xla_tuple %s5, %s6
  %s8 = sld [smem:[#allocation0]]
  $region61: #{tpu_custom_call.1} parent=0
    _
  %s10 = ssub.s32 1, %s8
  %s11 = scalar_select 0, %s10, %s8
  $region1: #{tpu_custom_call.1} parent=0
    #allocation2 [shape = 'u8[32768]{0}', space=vmem, size = 0x8000, scoped, tag = 'output window, operand 0']
    #allocation3 [shape = 's32[2]{0}', space=sflag, size = 0x8, scoped, tag = 'scoped memory for tpu_custom_call.1']
    #allocation4 [shape = 'u8[1024]{0}', space=vmem, size = 0x400, scoped, tag = 'output window, operand 1']
    #allocation5 [shape = 's32[2]{0}', space=sflag, size = 0x8, scoped, tag = 'scoped memory for tpu_custom_call.1']
    %12 = vsyncpa [#allocation3], 0
    %s13 = scalar_lea.sflag [#allocation3], 1
    %14 = vsyncpa %s13, 0
    %15 = vsyncpa [#allocation5], 0
    %s16 = scalar_lea.sflag [#allocation5], 1
    %17 = vsyncpa %s16, 0
    loop: start=0, step=1, limit=4
    $region2: #{tpu_custom_call.1} parent=1 // loop_pre_header
      _
    $region3: #{tpu_custom_call.1} parent=1 // loop_header
      %s19 = sphi 0, %s23
      %p20 = scmp.ge.s32.totalorder %s19, 4
      %s29 = sphi 0, %s31
      %s32 = sphi 0, %s29
      %s33 = sphi 0, %s32
      %s49 = sphi 0, %s33
      %s53 = sphi 0, %s53
      %s55 = sphi 0, %s53
      %s56 = sphi 0, %s55
      %s70 = sphi 0, %s56
      %s74 = sphi 0, %s74
      %s76 = sphi 0, %s74
      %s77 = sphi 0, %s76
      %s91 = sphi 0, %s77
      %s95 = sphi 0, %s95
      %s97 = sphi 0, %s95
      %s98 = sphi 0, %s97
      %s112 = sphi 0, %s98
      %s116 = sphi 0, %s116
      %s118 = sphi 0, %s116
      %s119 = sphi 0, %s118
      %s133 = sphi 0, %s119
      %s139 = sphi 0, %s141
      %s142 = sphi 0, %s139
      %s143 = sphi 0, %s142
      %s159 = sphi 0, %s143
      %s165 = sphi 0, %s167
      %s168 = sphi 0, %s165
      %s169 = sphi 0, %s168
      %s185 = sphi 0, %s169
    $region4: #{tpu_custom_call.1} parent=1 // loop_header_branch
      %22 = sbr.rel (%p20) target = $region8
    $region5: #{tpu_custom_call.1} parent=1 // loop_body
      %s24 = ssub.s32 %s19, 1
      %s25 = ssub.s32 %s19, 2
      %s26 = sadd.s32 %s19, 1
      %s27 = ssub.s32 %s19, %s26
      %p28 = scmp.eq.s32.totalorder %s27, 0
      %s30 = sadd.s32 %s29, 1
      %s31 = scalar_select %p28, %s29, %s30
      %p34 = pneg %p28
      %p35 = scmp.eq.s32.totalorder %s19, 1
      %p36 = por %p34, %p35
      %p37 = scmp.ne.s32.totalorder %s29, %s32
      %p38 = scmp.eq.s32.totalorder %s19, 0
      %p39 = por %p37, %p38
      %p40 = scmp.ne.s32.totalorder %s29, %s32
      %p41 = scmp.eq.s32.totalorder %s24, 1
      %p42 = por %p40, %p41
      %p43 = scmp.ne.s32.totalorder %s32, %s33
      %p44 = scmp.eq.s32.totalorder %s24, 0
      %p45 = por %p43, %p44
      %p46 = scmp.ne.s32.totalorder %s32, %s33
      %p47 = scmp.eq.s32.totalorder %s25, 1
      %p48 = por %p46, %p47
      %p50 = scmp.ne.s32.totalorder %s33, %s49
      %p51 = scmp.eq.s32.totalorder %s25, 0
      %p52 = por %p50, %p51
      %s54 = sadd.s32 %s53, 1
      %p57 = scmp.eq.s32.totalorder %s19, 1
      %p58 = scmp.ne.s32.totalorder %s53, %s55
      %p59 = scmp.eq.s32.totalorder %s19, 0
      %p60 = por %p58, %p59
      %p61 = scmp.ne.s32.totalorder %s53, %s55
      %p62 = scmp.eq.s32.totalorder %s24, 1
      %p63 = por %p61, %p62
      %p64 = scmp.ne.s32.totalorder %s55, %s56
      %p65 = scmp.eq.s32.totalorder %s24, 0
      %p66 = por %p64, %p65
      %p67 = scmp.ne.s32.totalorder %s55, %s56
      %p68 = scmp.eq.s32.totalorder %s25, 1
      %p69 = por %p67, %p68
      %p71 = scmp.ne.s32.totalorder %s56, %s70
      %p72 = scmp.eq.s32.totalorder %s25, 0
      %p73 = por %p71, %p72
      %s75 = sadd.s32 %s74, 1
      %p78 = scmp.eq.s32.totalorder %s19, 1
      %p79 = scmp.ne.s32.totalorder %s74, %s76
      %p80 = scmp.eq.s32.totalorder %s19, 0
      %p81 = por %p79, %p80
      %p82 = scmp.ne.s32.totalorder %s74, %s76
      %p83 = scmp.eq.s32.totalorder %s24, 1
      %p84 = por %p82, %p83
      %p85 = scmp.ne.s32.totalorder %s76, %s77
      %p86 = scmp.eq.s32.totalorder %s24, 0
      %p87 = por %p85, %p86
      %p88 = scmp.ne.s32.totalorder %s76, %s77
      %p89 = scmp.eq.s32.totalorder %s25, 1
      %p90 = por %p88, %p89
      %p92 = scmp.ne.s32.totalorder %s77, %s91
      %p93 = scmp.eq.s32.totalorder %s25, 0
      %p94 = por %p92, %p93
      %s96 = sadd.s32 %s95, 1
      %p99 = scmp.eq.s32.totalorder %s19, 1
      %p100 = scmp.ne.s32.totalorder %s95, %s97
      %p101 = scmp.eq.s32.totalorder %s19, 0
      %p102 = por %p100, %p101
      %p103 = scmp.ne.s32.totalorder %s95, %s97
      %p104 = scmp.eq.s32.totalorder %s24, 1
      %p105 = por %p103, %p104
      %p106 = scmp.ne.s32.totalorder %s97, %s98
      %p107 = scmp.eq.s32.totalorder %s24, 0
      %p108 = por %p106, %p107
      %p109 = scmp.ne.s32.totalorder %s97, %s98
      %p110 = scmp.eq.s32.totalorder %s25, 1
      %p111 = por %p109, %p110
      %p113 = scmp.ne.s32.totalorder %s98, %s112
      %p114 = scmp.eq.s32.totalorder %s25, 0
      %p115 = por %p113, %p114
      %s117 = sadd.s32 %s116, 1
      %p120 = scmp.eq.s32.totalorder %s19, 1
      %p121 = scmp.ne.s32.totalorder %s116, %s118
      %p122 = scmp.eq.s32.totalorder %s19, 0
      %p123 = por %p121, %p122
      %p124 = scmp.ne.s32.totalorder %s116, %s118
      %p125 = scmp.eq.s32.totalorder %s24, 1
      %p126 = por %p124, %p125
      %p127 = scmp.ne.s32.totalorder %s118, %s119
      %p128 = scmp.eq.s32.totalorder %s24, 0
      %p129 = por %p127, %p128
      %p130 = scmp.ne.s32.totalorder %s118, %s119
      %p131 = scmp.eq.s32.totalorder %s25, 1
      %p132 = por %p130, %p131
      %p134 = scmp.ne.s32.totalorder %s119, %s133
      %p135 = scmp.eq.s32.totalorder %s25, 0
      %p136 = por %p134, %p135
      %s137 = ssub.s32 %s19, %s26
      %p138 = scmp.eq.s32.totalorder %s137, 0
      %s140 = sadd.s32 %s139, 1
      %s141 = scalar_select %p138, %s139, %s140
      %p144 = pneg %p138
      %p145 = scmp.eq.s32.totalorder %s19, 1
      %p146 = por %p144, %p145
      %p147 = scmp.ne.s32.totalorder %s139, %s142
      %p148 = scmp.eq.s32.totalorder %s19, 0
      %p149 = por %p147, %p148
      %p150 = scmp.ne.s32.totalorder %s139, %s142
      %p151 = scmp.eq.s32.totalorder %s24, 1
      %p152 = por %p150, %p151
      %p153 = scmp.ne.s32.totalorder %s142, %s143
      %p154 = scmp.eq.s32.totalorder %s24, 0
      %p155 = por %p153, %p154
      %p156 = scmp.ne.s32.totalorder %s142, %s143
      %p157 = scmp.eq.s32.totalorder %s25, 1
      %p158 = por %p156, %p157
      %p160 = scmp.ne.s32.totalorder %s143, %s159
      %p161 = scmp.eq.s32.totalorder %s25, 0
      %p162 = por %p160, %p161
      %s163 = ssub.s32 %s19, %s26
      %p164 = scmp.eq.s32.totalorder %s163, 0
      %s166 = sadd.s32 %s165, 1
      %s167 = scalar_select %p164, %s165, %s166
      %p170 = pneg %p164
      %p171 = scmp.eq.s32.totalorder %s19, 1
      %p172 = por %p170, %p171
      %p173 = scmp.ne.s32.totalorder %s165, %s168
      %p174 = scmp.eq.s32.totalorder %s19, 0
      %p175 = por %p173, %p174
      %p176 = scmp.ne.s32.totalorder %s165, %s168
      %p177 = scmp.eq.s32.totalorder %s24, 1
      %p178 = por %p176, %p177
      %p179 = scmp.ne.s32.totalorder %s168, %s169
      %p180 = scmp.eq.s32.totalorder %s24, 0
      %p181 = por %p179, %p180
      %p182 = scmp.ne.s32.totalorder %s168, %s169
      %p183 = scmp.eq.s32.totalorder %s25, 1
      %p184 = por %p182, %p183
      %p186 = scmp.ne.s32.totalorder %s169, %s185
      %p187 = scmp.eq.s32.totalorder %s25, 0
      %p188 = por %p186, %p187
      %p189 = scmp.le.s32.totalorder 1, %s19
      %p190 = scmp.lt.s32.totalorder %s19, 3
      %p191 = pnand %p189, %p190
      %p192 = pneg %p191
      // Predicated region
      $region9: #{tpu_custom_call.1} parent=5 // pred_check
        _
      $region10: #{tpu_custom_call.1} parent=5 // pred_check_branch
        %194 = sbr.rel (%p191) target = $region12
      $region11: #{tpu_custom_call.1} parent=5 // pred_region
        %s195 = ssub.s32 %s19, 1
        // Predicated region
        $region13: #{tpu_custom_call.1} parent=11 // pred_check
          %p196 = pneg %p66
        $region14: #{tpu_custom_call.1} parent=11 // pred_check_branch
          %198 = sbr.rel (%p196) target = $region16
        $region15: #{tpu_custom_call.1} parent=11 // pred_region
          _
        $region16: #{tpu_custom_call.1} parent=11 // pred_fallthru
          _
        // Predicated region
        $region17: #{tpu_custom_call.1} parent=11 // pred_check
          %p199 = pneg %p87
        $region18: #{tpu_custom_call.1} parent=11 // pred_check_branch
          %201 = sbr.rel (%p199) target = $region20
        $region19: #{tpu_custom_call.1} parent=11 // pred_region
          _
        $region20: #{tpu_custom_call.1} parent=11 // pred_fallthru
          _
        // Predicated region
        $region21: #{tpu_custom_call.1} parent=11 // pred_check
          %p202 = pneg %p108
        $region22: #{tpu_custom_call.1} parent=11 // pred_check_branch
          %204 = sbr.rel (%p202) target = $region24
        $region23: #{tpu_custom_call.1} parent=11 // pred_region
          _
        $region24: #{tpu_custom_call.1} parent=11 // pred_fallthru
          _
        // Predicated region
        $region25: #{tpu_custom_call.1} parent=11 // pred_check
          %p205 = pneg %p129
        $region26: #{tpu_custom_call.1} parent=11 // pred_check_branch
          %207 = sbr.rel (%p205) target = $region28
        $region27: #{tpu_custom_call.1} parent=11 // pred_region
          _
        $region28: #{tpu_custom_call.1} parent=11 // pred_fallthru
          _
      $region12: #{tpu_custom_call.1} parent=5 // pred_fallthru
        _
      %p208 = scmp.lt.s32.totalorder %s19, 2
      // Predicated region
      $region29: #{tpu_custom_call.1} parent=5 // pred_check
        %p209 = pneg %p208
      $region30: #{tpu_custom_call.1} parent=5 // pred_check_branch
        %211 = sbr.rel (%p209) target = $region32
      $region31: #{tpu_custom_call.1} parent=5 // pred_region
        // Predicated region
        $region33: #{tpu_custom_call.1} parent=31 // pred_check
          %p212 = pneg %p39
        $region34: #{tpu_custom_call.1} parent=31 // pred_check_branch
          %214 = sbr.rel (%p212) target = $region36
        $region35: #{tpu_custom_call.1} parent=31 // pred_region
          %p215 = scmp.lt.s32.totalorder %s19, 1
          %s216 = scalar_select %p215, %s19, 1
          %s217 = smul.addr %s216, 4
          %s218 = scalar_lea.vmem %s0, %s217
        $region36: #{tpu_custom_call.1} parent=31 // pred_fallthru
          _
      $region32: #{tpu_custom_call.1} parent=5 // pred_fallthru
        _
      %p219 = scmp.le.s32.totalorder 1, %s19
      %p220 = scmp.lt.s32.totalorder %s19, 3
      %p221 = pnand %p219, %p220
      %p222 = pneg %p221
      // Predicated region
      $region37: #{tpu_custom_call.1} parent=5 // pred_check
        _
      $region38: #{tpu_custom_call.1} parent=5 // pred_check_branch
        %224 = sbr.rel (%p221) target = $region40
      $region39: #{tpu_custom_call.1} parent=5 // pred_region
        %s225 = ssub.s32 %s19, 1
        %p226 = scmp.lt.s32.totalorder %s24, 1
        %s227 = scalar_select %p226, %s24, 1
        %s228 = smul.addr %s227, 4
        %s229 = scalar_lea.vmem %s0, %s228
        %p230 = pneg %p45
        %p231 = pneg %p42
        %p232 = pneg %p66
        %p233 = pneg %p63
        %p234 = pneg %p87
        %p235 = pneg %p84
        %p236 = pneg %p108
        %p237 = pneg %p105
        %p238 = pneg %p129
        %p239 = pneg %p126
        %p240 = pneg %p155
        %p241 = pneg %p152
        %s242 = sand.u32 %s142, 1
        %s243 = scalar_lea.sflag [#allocation3], %s242
        %s244 = sand.u32 %s142, 1
        %s245 = smul.addr %s244, 32
        %s246 = scalar_lea.vmem [#allocation2], %s245
        %p247 = pneg %p181
        %p248 = pneg %p178
        %s249 = sand.u32 %s168, 1
        %s250 = scalar_lea.sflag [#allocation5], %s249
        %s251 = sand.u32 %s168, 1
        %s252 = scalar_lea.vmem [#allocation4], %s251
        %p253 = scmp.lt.s32.totalorder %s24, 1
        %s254 = scalar_select %p253, %s24, 1
        %s255 = smul.addr %s254, 4
        %s256 = scalar_lea.vmem %s0, %s255
        %v258 = vld [vmem:[%s256] sm:$0xf]
        %v259 = vld [vmem:[%s1] sm:$0xff]
        %v260 = vld [vmem:[%s1 + $0x8] sm:$0xff]
        %v261 = vld [vmem:[%s1 + $0x10] sm:$0xff]
        %v262 = vld [vmem:[%s1 + $0x18] sm:$0xff]
        %v263 = vld [vmem:[%s1 + $0x20] sm:$0xff]
        %v264 = vld [vmem:[%s1 + $0x28] sm:$0xff]
        %v265 = vld [vmem:[%s1 + $0x30] sm:$0xff]
        %v266 = vld [vmem:[%s1 + $0x38] sm:$0xff]
        %vm267 = vcmask 31744
        %v269 = vsel %vm267, %v259, 0
        %v272 = vsel %vm267, %v260, 0
        %v275 = vsel %vm267, %v261, 0
        %v278 = vsel %vm267, %v262, 0
        %v281 = vsel %vm267, %v263, 0
        %v284 = vsel %vm267, %v264, 0
        %v287 = vsel %vm267, %v265, 0
        %v290 = vsel %vm267, %v266, 0
        %vm292 = vcmask 1043456
        %v294 = vsel %vm292, %v258, 0
        %296 = vmatprep.subr.mxu0 0.0
        %297 = vmatpush1.msra.mxu0 %v294
        %298 = vmatprep.subr.mxu0 0.0
        %299 = vmatpush1.msra.mxu0 0.0
        %300 = vmatprep.subr.mxu0 0.0
        %301 = vmatpush1.msra.mxu0 0.0
        %302 = vmatprep.subr.mxu0 0.0
        %303 = vmatpush1.msra.mxu0 0.0
        %304 = vmatprep.subr.mxu0 0.0
        %305 = vmatpush1.msra.mxu0 0.0
        %306 = vmatprep.subr.mxu0 0.0
        %307 = vmatpush1.msra.mxu0 0.0
        %308 = vmatprep.subr.mxu0 0.0
        %309 = vmatpush1.msra.mxu0 0.0
        %310 = vmatprep.subr.mxu0 0.0
        %311 = vmatpush1.msra.mxu0 0.0
        %312 = vmatprep.subr.mxu0 0.0
        %313 = vmatpush1.msra.mxu0 0.0
        %314 = vmatprep.subr.mxu0 0.0
        %315 = vmatpush1.msra.mxu0 0.0
        %316 = vmatprep.subr.mxu0 0.0
        %317 = vmatpush1.msra.mxu0 0.0
        %318 = vmatprep.subr.mxu0 0.0
        %319 = vmatpush1.msra.mxu0 0.0
        %320 = vmatprep.subr.mxu0 0.0
        %321 = vmatpush1.msra.mxu0 0.0
        %322 = vmatprep.subr.mxu0 0.0
        %323 = vmatpush1.msra.mxu0 0.0
        %324 = vmatprep.subr.mxu0 0.0
        %325 = vmatpush1.msra.mxu0 0.0
        %326 = vmatprep.subr.mxu0 0.0
        %327 = vmatpush1.msra.mxu0 0.0
        %328 = vmatprep.subr.mxu0 0.0
        %329 = vmatpush1.msra.mxu0 0.0
        %330 = vmatprep.subr.mxu0 0.0
        %331 = vmatpush1.msra.mxu0 0.0
        %332 = vmatprep.subr.mxu0 0.0
        %333 = vmatpush1.msra.mxu0 0.0
        %334 = vmatprep.subr.mxu0 0.0
        %335 = vmatpush1.msra.mxu0 0.0
        %336 = vmatprep.subr.mxu0 0.0
        %337 = vmatpush1.msra.mxu0 0.0
        %338 = vmatprep.subr.mxu0 0.0
        %339 = vmatpush1.msra.mxu0 0.0
        %340 = vmatprep.subr.mxu0 0.0
        %341 = vmatpush1.msra.mxu0 0.0
        %342 = vmatprep.subr.mxu0 0.0
        %343 = vmatpush1.msra.mxu0 0.0
        %344 = vmatprep.subr.mxu0 0.0
        %345 = vmatpush1.msra.mxu0 0.0
        %346 = vmatprep.subr.mxu0 0.0
        %347 = vmatpush1.msra.mxu0 0.0
        %348 = vmatprep.subr.mxu0 0.0
        %349 = vmatpush1.msra.mxu0 0.0
        %350 = vmatprep.subr.mxu0 0.0
        %351 = vmatpush1.msra.mxu0 0.0
        %352 = vmatprep.subr.mxu0 0.0
        %353 = vmatpush1.msra.mxu0 0.0
        %354 = vmatprep.subr.mxu0 0.0
        %355 = vmatpush1.msra.mxu0 0.0
        %356 = vmatprep.subr.mxu0 0.0
        %357 = vmatpush1.msra.mxu0 0.0
        %358 = vmatprep.subr.mxu0 0.0
        %359 = vmatpush1.msra.mxu0 0.0
        %360 = vmatprep.mubr.f32.mxu0 0.0
        %361 = vmatmul.mubr.f32.gmra.mrb[0].mxu0 %v269
        %v362 = vpop.f32.mrb[0].mxu0
        %v363 = vadd.f32 0.0, %v362
        %v364 = vpop.f32.mrb[0].mxu0
        %365 = vmatprep.mubr.f32.mxu0 0.0
        %366 = vmatmul.mubr.f32.gmra.mrb[0].mxu0 %v272
        %v367 = vpop.f32.mrb[0].mxu0
        %v368 = vadd.f32 0.0, %v367
        %v369 = vpop.f32.mrb[0].mxu0
        %370 = vmatprep.mubr.f32.mxu0 0.0
        %371 = vmatmul.mubr.f32.gmra.mrb[0].mxu0 %v275
        %v372 = vpop.f32.mrb[0].mxu0
        %v373 = vadd.f32 0.0, %v372
        %v374 = vpop.f32.mrb[0].mxu0
        %375 = vmatprep.mubr.f32.mxu0 0.0
        %376 = vmatmul.mubr.f32.gmra.mrb[0].mxu0 %v278
        %v377 = vpop.f32.mrb[0].mxu0
        %v378 = vadd.f32 0.0, %v377
        %v379 = vpop.f32.mrb[0].mxu0
        %380 = vmatprep.mubr.f32.mxu0 0.0
        %381 = vmatmul.mubr.f32.gmra.mrb[0].mxu0 %v281
        %v382 = vpop.f32.mrb[0].mxu0
        %v383 = vadd.f32 0.0, %v382
        %v384 = vpop.f32.mrb[0].mxu0
        %385 = vmatprep.mubr.f32.mxu0 0.0
        %386 = vmatmul.mubr.f32.gmra.mrb[0].mxu0 %v284
        %v387 = vpop.f32.mrb[0].mxu0
        %v388 = vadd.f32 0.0, %v387
        %v389 = vpop.f32.mrb[0].mxu0
        %390 = vmatprep.mubr.f32.mxu0 0.0
        %391 = vmatmul.mubr.f32.gmra.mrb[0].mxu0 %v287
        %v392 = vpop.f32.mrb[0].mxu0
        %v393 = vadd.f32 0.0, %v392
        %v394 = vpop.f32.mrb[0].mxu0
        %395 = vmatprep.mubr.f32.mxu0 0.0
        %396 = vmatmul.mubr.f32.gmra.mrb[0].mxu0 %v290
        %v397 = vpop.f32.mrb[0].mxu0
        %v398 = vadd.f32 0.0, %v397
        %v399 = vpop.f32.mrb[0].mxu0
        %400 = vdwg.mxu0
        %v401 = vmax.f32 %v363, 0.0
        %v402 = vmax.f32 %v368, 0.0
        %v403 = vmax.f32 %v373, 0.0
        %v404 = vmax.f32 %v378, 0.0
        %v405 = vmax.f32 %v383, 0.0
        %v406 = vmax.f32 %v388, 0.0
        %v407 = vmax.f32 %v393, 0.0
        %v408 = vmax.f32 %v398, 0.0
        %v409 = vmax.f32 %v401, %v405
        %v410 = vmax.f32 %v402, %v406
        %v411 = vmax.f32 %v403, %v407
        %v412 = vmax.f32 %v404, %v408
        %v413 = vld [vmem:[%s2] sm:$0xf]
        %v414 = vld [vmem:[%s2 + $0x4] sm:$0xf]
        %v415 = vld [vmem:[%s2 + $0x8] sm:$0xf]
        %v416 = vld [vmem:[%s2 + $0xc] sm:$0xf]
        %v417 = vld [vmem:[%s2 + $0x10] sm:$0xf]
        %v418 = vld [vmem:[%s2 + $0x14] sm:$0xf]
        %v419 = vld [vmem:[%s2 + $0x18] sm:$0xf]
        %v420 = vld [vmem:[%s2 + $0x1c] sm:$0xf]
        %v421 = vld [vmem:[%s2 + $0x20] sm:$0xf]
        %v422 = vld [vmem:[%s2 + $0x24] sm:$0xf]
        %v423 = vld [vmem:[%s2 + $0x28] sm:$0xf]
        %v424 = vld [vmem:[%s2 + $0x2c] sm:$0xf]
        %v425 = vld [vmem:[%s2 + $0x30] sm:$0xf]
        %v426 = vld [vmem:[%s2 + $0x34] sm:$0xf]
        %v427 = vld [vmem:[%s2 + $0x38] sm:$0xf]
        %v428 = vld [vmem:[%s2 + $0x3c] sm:$0xf]
        %v429 = vld [vmem:[%s2 + $0x40] sm:$0xf]
        %v430 = vld [vmem:[%s2 + $0x44] sm:$0xf]
        %v431 = vld [vmem:[%s2 + $0x48] sm:$0xf]
        %v432 = vld [vmem:[%s2 + $0x4c] sm:$0xf]
        %v433 = vld [vmem:[%s2 + $0x50] sm:$0xf]
        %v434 = vld [vmem:[%s2 + $0x54] sm:$0xf]
        %v435 = vld [vmem:[%s2 + $0x58] sm:$0xf]
        %v436 = vld [vmem:[%s2 + $0x5c] sm:$0xf]
        %v437 = vld [vmem:[%s2 + $0x60] sm:$0xf]
        %v438 = vld [vmem:[%s2 + $0x64] sm:$0xf]
        %v439 = vld [vmem:[%s2 + $0x68] sm:$0xf]
        %v440 = vld [vmem:[%s2 + $0x6c] sm:$0xf]
        %v441 = vld [vmem:[%s2 + $0x70] sm:$0xf]
        %v442 = vld [vmem:[%s2 + $0x74] sm:$0xf]
        %v443 = vld [vmem:[%s2 + $0x78] sm:$0xf]
        %v444 = vld [vmem:[%s2 + $0x7c] sm:$0xf]
        %v445 = vpack.c.bf16 %v410, %v409
        %v446 = vpack.c.bf16 %v412, %v411
        %v447 = vld [vmem:[%s4] sm:$0xff]
        %v448 = vld [vmem:[%s4 + $0x8] sm:$0xff]
        %v449 = vld [vmem:[%s4 + $0x10] sm:$0xff]
        %v450 = vld [vmem:[%s4 + $0x18] sm:$0xff]
        %v451 = vld [vmem:[%s4 + $0x20] sm:$0xff]
        %v452 = vld [vmem:[%s4 + $0x28] sm:$0xff]
        %v453 = vld [vmem:[%s4 + $0x30] sm:$0xff]
        %v454 = vld [vmem:[%s4 + $0x38] sm:$0xff]
        %v455 = vld [vmem:[%s4 + $0x40] sm:$0xff]
        %v456 = vld [vmem:[%s4 + $0x48] sm:$0xff]
        %v457 = vld [vmem:[%s4 + $0x50] sm:$0xff]
        %v458 = vld [vmem:[%s4 + $0x58] sm:$0xff]
        %v459 = vld [vmem:[%s4 + $0x60] sm:$0xff]
        %v460 = vld [vmem:[%s4 + $0x68] sm:$0xff]
        %v461 = vld [vmem:[%s4 + $0x70] sm:$0xff]
        %v462 = vld [vmem:[%s4 + $0x78] sm:$0xff]
        %v463 = vld [vmem:[%s4 + $0x80] sm:$0xff]
        %v464 = vld [vmem:[%s4 + $0x88] sm:$0xff]
        %v465 = vld [vmem:[%s4 + $0x90] sm:$0xff]
        %v466 = vld [vmem:[%s4 + $0x98] sm:$0xff]
        %v467 = vld [vmem:[%s4 + $0xa0] sm:$0xff]
        %v468 = vld [vmem:[%s4 + $0xa8] sm:$0xff]
        %v469 = vld [vmem:[%s4 + $0xb0] sm:$0xff]
        %v470 = vld [vmem:[%s4 + $0xb8] sm:$0xff]
        %v471 = vld [vmem:[%s4 + $0xc0] sm:$0xff]
        %v472 = vld [vmem:[%s4 + $0xc8] sm:$0xff]
        %v473 = vld [vmem:[%s4 + $0xd0] sm:$0xff]
        %v474 = vld [vmem:[%s4 + $0xd8] sm:$0xff]
        %v475 = vld [vmem:[%s4 + $0xe0] sm:$0xff]
        %v476 = vld [vmem:[%s4 + $0xe8] sm:$0xff]
        %v477 = vld [vmem:[%s4 + $0xf0] sm:$0xff]
        %v478 = vld [vmem:[%s4 + $0xf8] sm:$0xff]
        %480 = vset.pattern.permute.xlu0 0
        %481 = vperm.xlu0 %480, %v447
        %v482 = vpop.permute.xlu0 %481
        %485 = vset.pattern.permute.xlu0 0
        %486 = vperm.xlu0 %485, %v448
        %v487 = vpop.permute.xlu0 %486
        %490 = vset.pattern.permute.xlu0 0
        %491 = vperm.xlu0 %490, %v449
        %v492 = vpop.permute.xlu0 %491
        %495 = vset.pattern.permute.xlu0 0
        %496 = vperm.xlu0 %495, %v450
        %v497 = vpop.permute.xlu0 %496
        %500 = vset.pattern.permute.xlu0 0
        %501 = vperm.xlu0 %500, %v451
        %v502 = vpop.permute.xlu0 %501
        %505 = vset.pattern.permute.xlu0 0
        %506 = vperm.xlu0 %505, %v452
        %v507 = vpop.permute.xlu0 %506
        %510 = vset.pattern.permute.xlu0 0
        %511 = vperm.xlu0 %510, %v453
        %v512 = vpop.permute.xlu0 %511
        %515 = vset.pattern.permute.xlu0 0
        %516 = vperm.xlu0 %515, %v454
        %v517 = vpop.permute.xlu0 %516
        %520 = vset.pattern.permute.xlu0 0
        %521 = vperm.xlu0 %520, %v455
        %v522 = vpop.permute.xlu0 %521
        %525 = vset.pattern.permute.xlu0 0
        %526 = vperm.xlu0 %525, %v456
        %v527 = vpop.permute.xlu0 %526
        %530 = vset.pattern.permute.xlu0 0
        %531 = vperm.xlu0 %530, %v457
        %v532 = vpop.permute.xlu0 %531
        %535 = vset.pattern.permute.xlu0 0
        %536 = vperm.xlu0 %535, %v458
        %v537 = vpop.permute.xlu0 %536
        %540 = vset.pattern.permute.xlu0 0
        %541 = vperm.xlu0 %540, %v459
        %v542 = vpop.permute.xlu0 %541
        %545 = vset.pattern.permute.xlu0 0
        %546 = vperm.xlu0 %545, %v460
        %v547 = vpop.permute.xlu0 %546
        %550 = vset.pattern.permute.xlu0 0
        %551 = vperm.xlu0 %550, %v461
        %v552 = vpop.permute.xlu0 %551
        %555 = vset.pattern.permute.xlu0 0
        %556 = vperm.xlu0 %555, %v462
        %v557 = vpop.permute.xlu0 %556
        %560 = vset.pattern.permute.xlu0 0
        %561 = vperm.xlu0 %560, %v463
        %v562 = vpop.permute.xlu0 %561
        %565 = vset.pattern.permute.xlu0 0
        %566 = vperm.xlu0 %565, %v464
        %v567 = vpop.permute.xlu0 %566
        %570 = vset.pattern.permute.xlu0 0
        %571 = vperm.xlu0 %570, %v465
        %v572 = vpop.permute.xlu0 %571
        %575 = vset.pattern.permute.xlu0 0
        %576 = vperm.xlu0 %575, %v466
        %v577 = vpop.permute.xlu0 %576
        %580 = vset.pattern.permute.xlu0 0
        %581 = vperm.xlu0 %580, %v467
        %v582 = vpop.permute.xlu0 %581
        %585 = vset.pattern.permute.xlu0 0
        %586 = vperm.xlu0 %585, %v468
        %v587 = vpop.permute.xlu0 %586
        %590 = vset.pattern.permute.xlu0 0
        %591 = vperm.xlu0 %590, %v469
        %v592 = vpop.permute.xlu0 %591
        %595 = vset.pattern.permute.xlu0 0
        %596 = vperm.xlu0 %595, %v470
        %v597 = vpop.permute.xlu0 %596
        %600 = vset.pattern.permute.xlu0 0
        %601 = vperm.xlu0 %600, %v471
        %v602 = vpop.permute.xlu0 %601
        %605 = vset.pattern.permute.xlu0 0
        %606 = vperm.xlu0 %605, %v472
        %v607 = vpop.permute.xlu0 %606
        %610 = vset.pattern.permute.xlu0 0
        %611 = vperm.xlu0 %610, %v473
        %v612 = vpop.permute.xlu0 %611
        %615 = vset.pattern.permute.xlu0 0
        %616 = vperm.xlu0 %615, %v474
        %v617 = vpop.permute.xlu0 %616
        %620 = vset.pattern.permute.xlu0 0
        %621 = vperm.xlu0 %620, %v475
        %v622 = vpop.permute.xlu0 %621
        %625 = vset.pattern.permute.xlu0 0
        %626 = vperm.xlu0 %625, %v476
        %v627 = vpop.permute.xlu0 %626
        %630 = vset.pattern.permute.xlu0 0
        %631 = vperm.xlu0 %630, %v477
        %v632 = vpop.permute.xlu0 %631
        %635 = vset.pattern.permute.xlu0 0
        %636 = vperm.xlu0 %635, %v478
        %v637 = vpop.permute.xlu0 %636
        %v671 = vunpack.c.l.b16 %v413
        %v672 = vunpack.c.l.b16 %v414
        %v673 = vunpack.c.l.b16 %v415
        %v674 = vunpack.c.l.b16 %v416
        %v675 = vunpack.c.l.b16 %v417
        %v676 = vunpack.c.l.b16 %v418
        %v677 = vunpack.c.l.b16 %v419
        %v678 = vunpack.c.l.b16 %v420
        %v679 = vunpack.c.l.b16 %v421
        %v680 = vunpack.c.l.b16 %v422
        %v681 = vunpack.c.l.b16 %v423
        %v682 = vunpack.c.l.b16 %v424
        %v683 = vunpack.c.l.b16 %v425
        %v684 = vunpack.c.l.b16 %v426
        %v685 = vunpack.c.l.b16 %v427
        %v686 = vunpack.c.l.b16 %v428
        %v687 = vunpack.c.l.b16 %v429
        %v688 = vunpack.c.l.b16 %v430
        %v689 = vunpack.c.l.b16 %v431
        %v690 = vunpack.c.l.b16 %v432
        %v691 = vunpack.c.l.b16 %v433
        %v692 = vunpack.c.l.b16 %v434
        %v693 = vunpack.c.l.b16 %v435
        %v694 = vunpack.c.l.b16 %v436
        %v695 = vunpack.c.l.b16 %v437
        %v696 = vunpack.c.l.b16 %v438
        %v697 = vunpack.c.l.b16 %v439
        %v698 = vunpack.c.l.b16 %v440
        %v699 = vunpack.c.l.b16 %v441
        %v700 = vunpack.c.l.b16 %v442
        %v701 = vunpack.c.l.b16 %v443
        %v702 = vunpack.c.l.b16 %v444
        %v703 = vpack.c.b16 %v672, %v671
        %v704 = vpack.c.b16 %v674, %v673
        %v705 = vpack.c.b16 %v676, %v675
        %v706 = vpack.c.b16 %v678, %v677
        %v707 = vpack.c.b16 %v680, %v679
        %v708 = vpack.c.b16 %v682, %v681
        %v709 = vpack.c.b16 %v684, %v683
        %v710 = vpack.c.b16 %v686, %v685
        %v711 = vpack.c.b16 %v688, %v687
        %v712 = vpack.c.b16 %v690, %v689
        %v713 = vpack.c.b16 %v692, %v691
        %v714 = vpack.c.b16 %v694, %v693
        %v715 = vpack.c.b16 %v696, %v695
        %v716 = vpack.c.b16 %v698, %v697
        %v717 = vpack.c.b16 %v700, %v699
        %v718 = vpack.c.b16 %v702, %v701
        %vm719 = vcmask 261120
        %v721 = vsel %vm719, %v703, 0
        %v724 = vsel %vm719, %v704, 0
        %v727 = vsel %vm719, %v705, 0
        %v730 = vsel %vm719, %v706, 0
        %v733 = vsel %vm719, %v707, 0
        %v736 = vsel %vm719, %v708, 0
        %v739 = vsel %vm719, %v709, 0
        %v742 = vsel %vm719, %v710, 0
        %v745 = vsel %vm719, %v711, 0
        %v748 = vsel %vm719, %v712, 0
        %v751 = vsel %vm719, %v713, 0
        %v754 = vsel %vm719, %v714, 0
        %v757 = vsel %vm719, %v715, 0
        %v760 = vsel %vm719, %v716, 0
        %v763 = vsel %vm719, %v717, 0
        %v766 = vsel %vm719, %v718, 0
        %768 = vmatprep.subr.bf16.mxu0 0
        %769 = vmatpush1.bf16.msra.mxu0 %v445
        %770 = vmatprep.subr.bf16.mxu0 0
        %771 = vmatpush1.bf16.msra.mxu0 %v446
        %772 = vmatprep.subr.bf16.mxu0 0
        %773 = vmatpush1.bf16.msra.mxu0 0
        %774 = vmatprep.subr.bf16.mxu0 0
        %775 = vmatpush1.bf16.msra.mxu0 0
        %776 = vmatprep.subr.bf16.mxu0 0
        %777 = vmatpush1.bf16.msra.mxu0 0
        %778 = vmatprep.subr.bf16.mxu0 0
        %779 = vmatpush1.bf16.msra.mxu0 0
        %780 = vmatprep.subr.bf16.mxu0 0
        %781 = vmatpush1.bf16.msra.mxu0 0
        %782 = vmatprep.subr.bf16.mxu0 0
        %783 = vmatpush1.bf16.msra.mxu0 0
        %784 = vmatprep.subr.bf16.mxu0 0
        %785 = vmatpush1.bf16.msra.mxu0 0
        %786 = vmatprep.subr.bf16.mxu0 0
        %787 = vmatpush1.bf16.msra.mxu0 0
        %788 = vmatprep.subr.bf16.mxu0 0
        %789 = vmatpush1.bf16.msra.mxu0 0
        %790 = vmatprep.subr.bf16.mxu0 0
        %791 = vmatpush1.bf16.msra.mxu0 0
        %792 = vmatprep.subr.bf16.mxu0 0
        %793 = vmatpush1.bf16.msra.mxu0 0
        %794 = vmatprep.subr.bf16.mxu0 0
        %795 = vmatpush1.bf16.msra.mxu0 0
        %796 = vmatprep.subr.bf16.mxu0 0
        %797 = vmatpush1.bf16.msra.mxu0 0
        %798 = vmatprep.subr.bf16.mxu0 0
        %799 = vmatpush1.bf16.msra.mxu0 0
        %800 = vmatprep.mubr.bf16.mxu0 0
        %801 = vmatmul.mubr.bf16.gmra.mrb[0].mxu0 %v721
        %v802 = vpop.f32.mrb[0].mxu0
        %v803 = vadd.f32 %v482, %v802
        %v804 = vpop.f32.mrb[0].mxu0
        %v805 = vpop.f32.mrb[0].mxu0
        %v806 = vadd.f32 %v487, %v805
        %v807 = vpop.f32.mrb[0].mxu0
        %808 = vmatprep.mubr.bf16.mxu0 0
        %809 = vmatmul.mubr.bf16.gmra.mrb[0].mxu0 %v724
        %v810 = vpop.f32.mrb[0].mxu0
        %v811 = vadd.f32 %v492, %v810
        %v812 = vpop.f32.mrb[0].mxu0
        %v813 = vpop.f32.mrb[0].mxu0
        %v814 = vadd.f32 %v497, %v813
        %v815 = vpop.f32.mrb[0].mxu0
        %816 = vmatprep.mubr.bf16.mxu0 0
        %817 = vmatmul.mubr.bf16.gmra.mrb[0].mxu0 %v727
        %v818 = vpop.f32.mrb[0].mxu0
        %v819 = vadd.f32 %v502, %v818
        %v820 = vpop.f32.mrb[0].mxu0
        %v821 = vpop.f32.mrb[0].mxu0
        %v822 = vadd.f32 %v507, %v821
        %v823 = vpop.f32.mrb[0].mxu0
        %824 = vmatprep.mubr.bf16.mxu0 0
        %825 = vmatmul.mubr.bf16.gmra.mrb[0].mxu0 %v730
        %v826 = vpop.f32.mrb[0].mxu0
        %v827 = vadd.f32 %v512, %v826
        %v828 = vpop.f32.mrb[0].mxu0
        %v829 = vpop.f32.mrb[0].mxu0
        %v830 = vadd.f32 %v517, %v829
        %v831 = vpop.f32.mrb[0].mxu0
        %832 = vmatprep.mubr.bf16.mxu0 0
        %833 = vmatmul.mubr.bf16.gmra.mrb[0].mxu0 %v733
        %v834 = vpop.f32.mrb[0].mxu0
        %v835 = vadd.f32 %v522, %v834
        %v836 = vpop.f32.mrb[0].mxu0
        %v837 = vpop.f32.mrb[0].mxu0
        %v838 = vadd.f32 %v527, %v837
        %v839 = vpop.f32.mrb[0].mxu0
        %840 = vmatprep.mubr.bf16.mxu0 0
        %841 = vmatmul.mubr.bf16.gmra.mrb[0].mxu0 %v736
        %v842 = vpop.f32.mrb[0].mxu0
        %v843 = vadd.f32 %v532, %v842
        %v844 = vpop.f32.mrb[0].mxu0
        %v845 = vpop.f32.mrb[0].mxu0
        %v846 = vadd.f32 %v537, %v845
        %v847 = vpop.f32.mrb[0].mxu0
        %848 = vmatprep.mubr.bf16.mxu0 0
        %849 = vmatmul.mubr.bf16.gmra.mrb[0].mxu0 %v739
        %v850 = vpop.f32.mrb[0].mxu0
        %v851 = vadd.f32 %v542, %v850
        %v852 = vpop.f32.mrb[0].mxu0
        %v853 = vpop.f32.mrb[0].mxu0
        %v854 = vadd.f32 %v547, %v853
        %v855 = vpop.f32.mrb[0].mxu0
        %856 = vmatprep.mubr.bf16.mxu0 0
        %857 = vmatmul.mubr.bf16.gmra.mrb[0].mxu0 %v742
        %v858 = vpop.f32.mrb[0].mxu0
        %v859 = vadd.f32 %v552, %v858
        %v860 = vpop.f32.mrb[0].mxu0
        %v861 = vpop.f32.mrb[0].mxu0
        %v862 = vadd.f32 %v557, %v861
        %v863 = vpop.f32.mrb[0].mxu0
        %864 = vmatprep.mubr.bf16.mxu0 0
        %865 = vmatmul.mubr.bf16.gmra.mrb[0].mxu0 %v745
        %v866 = vpop.f32.mrb[0].mxu0
        %v867 = vadd.f32 %v562, %v866
        %v868 = vpop.f32.mrb[0].mxu0
        %v869 = vpop.f32.mrb[0].mxu0
        %v870 = vadd.f32 %v567, %v869
        %v871 = vpop.f32.mrb[0].mxu0
        %872 = vmatprep.mubr.bf16.mxu0 0
        %873 = vmatmul.mubr.bf16.gmra.mrb[0].mxu0 %v748
        %v874 = vpop.f32.mrb[0].mxu0
        %v875 = vadd.f32 %v572, %v874
        %v876 = vpop.f32.mrb[0].mxu0
        %v877 = vpop.f32.mrb[0].mxu0
        %v878 = vadd.f32 %v577, %v877
        %v879 = vpop.f32.mrb[0].mxu0
        %880 = vmatprep.mubr.bf16.mxu0 0
        %881 = vmatmul.mubr.bf16.gmra.mrb[0].mxu0 %v751
        %v882 = vpop.f32.mrb[0].mxu0
        %v883 = vadd.f32 %v582, %v882
        %v884 = vpop.f32.mrb[0].mxu0
        %v885 = vpop.f32.mrb[0].mxu0
        %v886 = vadd.f32 %v587, %v885
        %v887 = vpop.f32.mrb[0].mxu0
        %888 = vmatprep.mubr.bf16.mxu0 0
        %889 = vmatmul.mubr.bf16.gmra.mrb[0].mxu0 %v754
        %v890 = vpop.f32.mrb[0].mxu0
        %v891 = vadd.f32 %v592, %v890
        %v892 = vpop.f32.mrb[0].mxu0
        %v893 = vpop.f32.mrb[0].mxu0
        %v894 = vadd.f32 %v597, %v893
        %v895 = vpop.f32.mrb[0].mxu0
        %896 = vmatprep.mubr.bf16.mxu0 0
        %897 = vmatmul.mubr.bf16.gmra.mrb[0].mxu0 %v757
        %v898 = vpop.f32.mrb[0].mxu0
        %v899 = vadd.f32 %v602, %v898
        %v900 = vpop.f32.mrb[0].mxu0
        %v901 = vpop.f32.mrb[0].mxu0
        %v902 = vadd.f32 %v607, %v901
        %v903 = vpop.f32.mrb[0].mxu0
        %904 = vmatprep.mubr.bf16.mxu0 0
        %905 = vmatmul.mubr.bf16.gmra.mrb[0].mxu0 %v760
        %v906 = vpop.f32.mrb[0].mxu0
        %v907 = vadd.f32 %v612, %v906
        %v908 = vpop.f32.mrb[0].mxu0
        %v909 = vpop.f32.mrb[0].mxu0
        %v910 = vadd.f32 %v617, %v909
        %v911 = vpop.f32.mrb[0].mxu0
        %912 = vmatprep.mubr.bf16.mxu0 0
        %913 = vmatmul.mubr.bf16.gmra.mrb[0].mxu0 %v763
        %v914 = vpop.f32.mrb[0].mxu0
        %v915 = vadd.f32 %v622, %v914
        %v916 = vpop.f32.mrb[0].mxu0
        %v917 = vpop.f32.mrb[0].mxu0
        %v918 = vadd.f32 %v627, %v917
        %v919 = vpop.f32.mrb[0].mxu0
        %920 = vmatprep.mubr.bf16.mxu0 0
        %921 = vmatmul.mubr.bf16.gmra.mrb[0].mxu0 %v766
        %v922 = vpop.f32.mrb[0].mxu0
        %v923 = vadd.f32 %v632, %v922
        %v924 = vpop.f32.mrb[0].mxu0
        %v925 = vpop.f32.mrb[0].mxu0
        %v926 = vadd.f32 %v637, %v925
        %v927 = vpop.f32.mrb[0].mxu0
        %928 = vdwg.mxu0
        %v929 = vmax.f32 %v803, 0.0
        %v930 = vmax.f32 %v806, 0.0
        %v931 = vmax.f32 %v811, 0.0
        %v932 = vmax.f32 %v814, 0.0
        %v933 = vmax.f32 %v819, 0.0
        %v934 = vmax.f32 %v822, 0.0
        %v935 = vmax.f32 %v827, 0.0
        %v936 = vmax.f32 %v830, 0.0
        %v937 = vmax.f32 %v835, 0.0
        %v938 = vmax.f32 %v838, 0.0
        %v939 = vmax.f32 %v843, 0.0
        %v940 = vmax.f32 %v846, 0.0
        %v941 = vmax.f32 %v851, 0.0
        %v942 = vmax.f32 %v854, 0.0
        %v943 = vmax.f32 %v859, 0.0
        %v944 = vmax.f32 %v862, 0.0
        %v945 = vmax.f32 %v867, 0.0
        %v946 = vmax.f32 %v870, 0.0
        %v947 = vmax.f32 %v875, 0.0
        %v948 = vmax.f32 %v878, 0.0
        %v949 = vmax.f32 %v883, 0.0
        %v950 = vmax.f32 %v886, 0.0
        %v951 = vmax.f32 %v891, 0.0
        %v952 = vmax.f32 %v894, 0.0
        %v953 = vmax.f32 %v899, 0.0
        %v954 = vmax.f32 %v902, 0.0
        %v955 = vmax.f32 %v907, 0.0
        %v956 = vmax.f32 %v910, 0.0
        %v957 = vmax.f32 %v915, 0.0
        %v958 = vmax.f32 %v918, 0.0
        %v959 = vmax.f32 %v923, 0.0
        %v960 = vmax.f32 %v926, 0.0
        %v961 = vld [vmem:[%s3] sm:$0xff]
        %v962 = vld [vmem:[%s3 + $0x8] sm:$0xff]
        %v963 = vld [vmem:[%s3 + $0x10] sm:$0xff]
        %v964 = vld [vmem:[%s3 + $0x18] sm:$0xff]
        %v965 = vld [vmem:[%s3 + $0x20] sm:$0xff]
        %v966 = vld [vmem:[%s3 + $0x28] sm:$0xff]
        %v967 = vld [vmem:[%s3 + $0x30] sm:$0xff]
        %v968 = vld [vmem:[%s3 + $0x38] sm:$0xff]
        %v969 = vld [vmem:[%s3 + $0x40] sm:$0xff]
        %v970 = vld [vmem:[%s3 + $0x48] sm:$0xff]
        %v971 = vld [vmem:[%s3 + $0x50] sm:$0xff]
        %v972 = vld [vmem:[%s3 + $0x58] sm:$0xff]
        %v973 = vld [vmem:[%s3 + $0x60] sm:$0xff]
        %v974 = vld [vmem:[%s3 + $0x68] sm:$0xff]
        %v975 = vld [vmem:[%s3 + $0x70] sm:$0xff]
        %v976 = vld [vmem:[%s3 + $0x78] sm:$0xff]
        %v977 = vpack.c.bf16 %v930, %v929
        %v978 = vpack.c.bf16 %v932, %v931
        %v979 = vpack.c.bf16 %v934, %v933
        %v980 = vpack.c.bf16 %v936, %v935
        %v981 = vpack.c.bf16 %v938, %v937
        %v982 = vpack.c.bf16 %v940, %v939
        %v983 = vpack.c.bf16 %v942, %v941
        %v984 = vpack.c.bf16 %v944, %v943
        %v985 = vpack.c.bf16 %v946, %v945
        %v986 = vpack.c.bf16 %v948, %v947
        %v987 = vpack.c.bf16 %v950, %v949
        %v988 = vpack.c.bf16 %v952, %v951
        %v989 = vpack.c.bf16 %v954, %v953
        %v990 = vpack.c.bf16 %v956, %v955
        %v991 = vpack.c.bf16 %v958, %v957
        %v992 = vpack.c.bf16 %v960, %v959
        %v993 = vld [vmem:[%s4] sm:$0xff]
        %v994 = vld [vmem:[%s4 + $0x8] sm:$0xff]
        %v995 = vld [vmem:[%s4 + $0x10] sm:$0xff]
        %v996 = vld [vmem:[%s4 + $0x18] sm:$0xff]
        %v997 = vld [vmem:[%s4 + $0x20] sm:$0xff]
        %v998 = vld [vmem:[%s4 + $0x28] sm:$0xff]
        %v999 = vld [vmem:[%s4 + $0x30] sm:$0xff]
        %v1000 = vld [vmem:[%s4 + $0x38] sm:$0xff]
        %v1001 = vld [vmem:[%s4 + $0x40] sm:$0xff]
        %v1002 = vld [vmem:[%s4 + $0x48] sm:$0xff]
        %v1003 = vld [vmem:[%s4 + $0x50] sm:$0xff]
        %v1004 = vld [vmem:[%s4 + $0x58] sm:$0xff]
        %v1005 = vld [vmem:[%s4 + $0x60] sm:$0xff]
        %v1006 = vld [vmem:[%s4 + $0x68] sm:$0xff]
        %v1007 = vld [vmem:[%s4 + $0x70] sm:$0xff]
        %v1008 = vld [vmem:[%s4 + $0x78] sm:$0xff]
        %1010 = vset.pattern.permute.xlu0 1
        %1011 = vperm.xlu0 %1010, %v993
        %v1012 = vpop.permute.xlu0 %1011
        %1015 = vset.pattern.permute.xlu0 1
        %1016 = vperm.xlu0 %1015, %v994
        %v1017 = vpop.permute.xlu0 %1016
        %1020 = vset.pattern.permute.xlu0 1
        %1021 = vperm.xlu0 %1020, %v995
        %v1022 = vpop.permute.xlu0 %1021
        %1025 = vset.pattern.permute.xlu0 1
        %1026 = vperm.xlu0 %1025, %v996
        %v1027 = vpop.permute.xlu0 %1026
        %1030 = vset.pattern.permute.xlu0 1
        %1031 = vperm.xlu0 %1030, %v997
        %v1032 = vpop.permute.xlu0 %1031
        %1035 = vset.pattern.permute.xlu0 1
        %1036 = vperm.xlu0 %1035, %v998
        %v1037 = vpop.permute.xlu0 %1036
        %1040 = vset.pattern.permute.xlu0 1
        %1041 = vperm.xlu0 %1040, %v999
        %v1042 = vpop.permute.xlu0 %1041
        %1045 = vset.pattern.permute.xlu0 1
        %1046 = vperm.xlu0 %1045, %v1000
        %v1047 = vpop.permute.xlu0 %1046
        %1050 = vset.pattern.permute.xlu0 1
        %1051 = vperm.xlu0 %1050, %v1001
        %v1052 = vpop.permute.xlu0 %1051
        %1055 = vset.pattern.permute.xlu0 1
        %1056 = vperm.xlu0 %1055, %v1002
        %v1057 = vpop.permute.xlu0 %1056
        %1060 = vset.pattern.permute.xlu0 1
        %1061 = vperm.xlu0 %1060, %v1003
        %v1062 = vpop.permute.xlu0 %1061
        %1065 = vset.pattern.permute.xlu0 1
        %1066 = vperm.xlu0 %1065, %v1004
        %v1067 = vpop.permute.xlu0 %1066
        %1070 = vset.pattern.permute.xlu0 1
        %1071 = vperm.xlu0 %1070, %v1005
        %v1072 = vpop.permute.xlu0 %1071
        %1074 = vset.pattern.permute.xlu0 1
        %1075 = vperm.xlu0 %1074, %v1006
        %v1076 = vpop.permute.xlu0 %1075
        %1078 = vset.pattern.permute.xlu0 1
        %1079 = vperm.xlu0 %1078, %v1007
        %v1080 = vpop.permute.xlu0 %1079
        %1082 = vset.pattern.permute.xlu0 1
        %1083 = vperm.xlu0 %1082, %v1008
        %v1084 = vpop.permute.xlu0 %1083
        %v1101 = vunpack.c.l.b16 %v961
        %v1102 = vunpack.c.h.b16 %v961
        %v1103 = vunpack.c.l.b16 %v962
        %v1104 = vunpack.c.h.b16 %v962
        %v1105 = vunpack.c.l.b16 %v963
        %v1106 = vunpack.c.h.b16 %v963
        %v1107 = vunpack.c.l.b16 %v964
        %v1108 = vunpack.c.h.b16 %v964
        %v1109 = vunpack.c.l.b16 %v965
        %v1110 = vunpack.c.h.b16 %v965
        %v1111 = vunpack.c.l.b16 %v966
        %v1112 = vunpack.c.h.b16 %v966
        %v1113 = vunpack.c.l.b16 %v967
        %v1114 = vunpack.c.h.b16 %v967
        %v1115 = vunpack.c.l.b16 %v968
        %v1116 = vunpack.c.h.b16 %v968
        %v1117 = vunpack.c.l.b16 %v969
        %v1118 = vunpack.c.h.b16 %v969
        %v1119 = vunpack.c.l.b16 %v970
        %v1120 = vunpack.c.h.b16 %v970
        %v1121 = vunpack.c.l.b16 %v971
        %v1122 = vunpack.c.h.b16 %v971
        %v1123 = vunpack.c.l.b16 %v972
        %v1124 = vunpack.c.h.b16 %v972
        %v1125 = vunpack.c.l.b16 %v973
        %v1126 = vunpack.c.h.b16 %v973
        %v1127 = vunpack.c.l.b16 %v974
        %v1128 = vunpack.c.h.b16 %v974
        %v1129 = vunpack.c.l.b16 %v975
        %v1130 = vunpack.c.h.b16 %v975
        %v1131 = vunpack.c.l.b16 %v976
        %v1132 = vunpack.c.h.b16 %v976
        %v1133 = vpack.c.b16 %v1103, %v1101
        %v1134 = vpack.c.b16 %v1104, %v1102
        %v1135 = vpack.c.b16 %v1107, %v1105
        %v1136 = vpack.c.b16 %v1108, %v1106
        %v1137 = vpack.c.b16 %v1111, %v1109
        %v1138 = vpack.c.b16 %v1112, %v1110
        %v1139 = vpack.c.b16 %v1115, %v1113
        %v1140 = vpack.c.b16 %v1116, %v1114
        %v1141 = vpack.c.b16 %v1119, %v1117
        %v1142 = vpack.c.b16 %v1120, %v1118
        %v1143 = vpack.c.b16 %v1123, %v1121
        %v1144 = vpack.c.b16 %v1124, %v1122
        %v1145 = vpack.c.b16 %v1127, %v1125
        %v1146 = vpack.c.b16 %v1128, %v1126
        %v1147 = vpack.c.b16 %v1131, %v1129
        %v1148 = vpack.c.b16 %v1132, %v1130
        %1165 = vmatprep.subr.bf16.mxu0 0
        %1166 = vmatpush1.bf16.msra.mxu0 %v977
        %1167 = vmatprep.subr.bf16.mxu0 0
        %1168 = vmatpush1.bf16.msra.mxu0 %v978
        %1169 = vmatprep.subr.bf16.mxu0 0
        %1170 = vmatpush1.bf16.msra.mxu0 %v979
        %1171 = vmatprep.subr.bf16.mxu0 0
        %1172 = vmatpush1.bf16.msra.mxu0 %v980
        %1173 = vmatprep.subr.bf16.mxu0 0
        %1174 = vmatpush1.bf16.msra.mxu0 %v981
        %1175 = vmatprep.subr.bf16.mxu0 0
        %1176 = vmatpush1.bf16.msra.mxu0 %v982
        %1177 = vmatprep.subr.bf16.mxu0 0
        %1178 = vmatpush1.bf16.msra.mxu0 %v983
        %1179 = vmatprep.subr.bf16.mxu0 0
        %1180 = vmatpush1.bf16.msra.mxu0 %v984
        %1181 = vmatprep.subr.bf16.mxu0 0
        %1182 = vmatpush1.bf16.msra.mxu0 %v985
        %1183 = vmatprep.subr.bf16.mxu0 0
        %1184 = vmatpush1.bf16.msra.mxu0 %v986
        %1185 = vmatprep.subr.bf16.mxu0 0
        %1186 = vmatpush1.bf16.msra.mxu0 %v987
        %1187 = vmatprep.subr.bf16.mxu0 0
        %1188 = vmatpush1.bf16.msra.mxu0 %v988
        %1189 = vmatprep.subr.bf16.mxu0 0
        %1190 = vmatpush1.bf16.msra.mxu0 %v989
        %1191 = vmatprep.subr.bf16.mxu0 0
        %1192 = vmatpush1.bf16.msra.mxu0 %v990
        %1193 = vmatprep.subr.bf16.mxu0 0
        %1194 = vmatpush1.bf16.msra.mxu0 %v991
        %1195 = vmatprep.subr.bf16.mxu0 0
        %1196 = vmatpush1.bf16.msra.mxu0 %v992
        %1197 = vmatprep.mubr.bf16.mxu0 %v1134
        %1198 = vmatmul.mubr.bf16.gmra.mrb[0].mxu0 %v1133
        %v1199 = vpop.f32.mrb[0].mxu0
        %v1200 = vadd.f32 %v1012, %v1199
        %v1201 = vpop.f32.mrb[0].mxu0
        %v1202 = vpop.f32.mrb[0].mxu0
        %v1203 = vadd.f32 %v1017, %v1202
        %v1204 = vpop.f32.mrb[0].mxu0
        %1205 = vmatprep.mubr.bf16.mxu0 %v1136
        %1206 = vmatmul.mubr.bf16.gmra.mrb[0].mxu0 %v1135
        %v1207 = vpop.f32.mrb[0].mxu0
        %v1208 = vadd.f32 %v1022, %v1207
        %v1209 = vpop.f32.mrb[0].mxu0
        %v1210 = vpop.f32.mrb[0].mxu0
        %v1211 = vadd.f32 %v1027, %v1210
        %v1212 = vpop.f32.mrb[0].mxu0
        %1213 = vmatprep.mubr.bf16.mxu0 %v1138
        %1214 = vmatmul.mubr.bf16.gmra.mrb[0].mxu0 %v1137
        %v1215 = vpop.f32.mrb[0].mxu0
        %v1216 = vadd.f32 %v1032, %v1215
        %v1217 = vpop.f32.mrb[0].mxu0
        %v1218 = vpop.f32.mrb[0].mxu0
        %v1219 = vadd.f32 %v1037, %v1218
        %v1220 = vpop.f32.mrb[0].mxu0
        %1221 = vmatprep.mubr.bf16.mxu0 %v1140
        %1222 = vmatmul.mubr.bf16.gmra.mrb[0].mxu0 %v1139
        %v1223 = vpop.f32.mrb[0].mxu0
        %v1224 = vadd.f32 %v1042, %v1223
        %v1225 = vpop.f32.mrb[0].mxu0
        %v1226 = vpop.f32.mrb[0].mxu0
        %v1227 = vadd.f32 %v1047, %v1226
        %v1228 = vpop.f32.mrb[0].mxu0
        %1229 = vmatprep.mubr.bf16.mxu0 %v1142
        %1230 = vmatmul.mubr.bf16.gmra.mrb[0].mxu0 %v1141
        %v1231 = vpop.f32.mrb[0].mxu0
        %v1232 = vadd.f32 %v1052, %v1231
        %v1233 = vpop.f32.mrb[0].mxu0
        %v1234 = vpop.f32.mrb[0].mxu0
        %v1235 = vadd.f32 %v1057, %v1234
        %v1236 = vpop.f32.mrb[0].mxu0
        %1237 = vmatprep.mubr.bf16.mxu0 %v1144
        %1238 = vmatmul.mubr.bf16.gmra.mrb[0].mxu0 %v1143
        %v1239 = vpop.f32.mrb[0].mxu0
        %v1240 = vadd.f32 %v1062, %v1239
        %v1241 = vpop.f32.mrb[0].mxu0
        %v1242 = vpop.f32.mrb[0].mxu0
        %v1243 = vadd.f32 %v1067, %v1242
        %v1244 = vpop.f32.mrb[0].mxu0
        %1245 = vmatprep.mubr.bf16.mxu0 %v1146
        %1246 = vmatmul.mubr.bf16.gmra.mrb[0].mxu0 %v1145
        %v1247 = vpop.f32.mrb[0].mxu0
        %v1248 = vpop.f32.mrb[0].mxu0
        %v1249 = vpop.f32.mrb[0].mxu0
        %v1250 = vpop.f32.mrb[0].mxu0
        %1251 = vmatprep.mubr.bf16.mxu0 %v1148
        %1252 = vmatmul.mubr.bf16.gmra.mrb[0].mxu0 %v1147
        %v1253 = vpop.f32.mrb[0].mxu0
        %v1254 = vpop.f32.mrb[0].mxu0
        %v1255 = vpop.f32.mrb[0].mxu0
        %v1256 = vpop.f32.mrb[0].mxu0
        %1257 = vdwg.mxu0
        %1258 = vst [vmem:[%s246] sm:$0xff] %v1200
        %1259 = vst [vmem:[%s246 + $0x8] sm:$0xff] %v1203
        %1260 = vst [vmem:[%s246 + $0x10] sm:$0xff] %v1208
        %1261 = vst [vmem:[%s246 + $0x18] sm:$0xff] %v1211
        %v1262 = vmax.f32 %v1216, 0.0
        %v1263 = vmax.f32 %v1219, 0.0
        %v1264 = vmax.f32 %v1224, 0.0
        %v1265 = vmax.f32 %v1227, 0.0
        %v1266 = vmax.f32 %v1232, 0.0
        %v1267 = vmax.f32 %v1235, 0.0
        %v1268 = vmax.f32 %v1240, 0.0
        %v1269 = vmax.f32 %v1243, 0.0
        %v1270 = vld [vmem:[%s4] sm:$0xff]
        %v1271 = vld [vmem:[%s4 + $0x8] sm:$0xff]
        %v1272 = vld [vmem:[%s4 + $0x10] sm:$0xff]
        %v1273 = vld [vmem:[%s4 + $0x18] sm:$0xff]
        %v1274 = vld [vmem:[%s4 + $0x20] sm:$0xff]
        %v1275 = vld [vmem:[%s4 + $0x28] sm:$0xff]
        %v1276 = vld [vmem:[%s4 + $0x30] sm:$0xff]
        %v1277 = vld [vmem:[%s4 + $0x38] sm:$0xff]
        %1279 = vset.pattern.permute.xlu0 2
        %1280 = vperm.xlu0 %1279, %v1270
        %v1281 = vpop.permute.xlu0 %1280
        %1284 = vset.pattern.permute.xlu0 2
        %1285 = vperm.xlu0 %1284, %v1271
        %v1286 = vpop.permute.xlu0 %1285
        %1289 = vset.pattern.permute.xlu0 2
        %1290 = vperm.xlu0 %1289, %v1272
        %v1291 = vpop.permute.xlu0 %1290
        %1294 = vset.pattern.permute.xlu0 2
        %1295 = vperm.xlu0 %1294, %v1273
        %v1296 = vpop.permute.xlu0 %1295
        %1299 = vset.pattern.permute.xlu0 2
        %1300 = vperm.xlu0 %1299, %v1274
        %v1301 = vpop.permute.xlu0 %1300
        %1304 = vset.pattern.permute.xlu0 2
        %1305 = vperm.xlu0 %1304, %v1275
        %v1306 = vpop.permute.xlu0 %1305
        %1309 = vset.pattern.permute.xlu0 2
        %1310 = vperm.xlu0 %1309, %v1276
        %v1311 = vpop.permute.xlu0 %1310
        %1314 = vset.pattern.permute.xlu0 2
        %1315 = vperm.xlu0 %1314, %v1277
        %v1316 = vpop.permute.xlu0 %1315
        %v1318 = vmul.f32 %v1262, %v1281
        %v1319 = vmul.f32 %v1263, %v1286
        %v1320 = vmul.f32 %v1264, %v1291
        %v1321 = vmul.f32 %v1265, %v1296
        %v1322 = vmul.f32 %v1266, %v1301
        %v1323 = vmul.f32 %v1267, %v1306
        %v1324 = vmul.f32 %v1268, %v1311
        %v1325 = vmul.f32 %v1269, %v1316
        %v1326 = vadd.f32 %v1318, %v1319
        %v1327 = vadd.f32 %v1326, %v1320
        %v1328 = vadd.f32 %v1327, %v1321
        %v1329 = vadd.f32 %v1328, %v1322
        %v1330 = vadd.f32 %v1329, %v1323
        %v1331 = vadd.f32 %v1330, %v1324
        %v1332 = vadd.f32 %v1331, %v1325
        %v1333 = vrot.slane %v1332, 4
        %v1334 = vadd.f32 %v1332, %v1333
        %v1335 = vrot.slane %v1334, 2
        %v1336 = vadd.f32 %v1334, %v1335
        %v1337 = vrot.slane %v1336, 1
        %v1338 = vadd.f32 %v1336, %v1337
        %v1339 = vld [vmem:[%s4] sm:$0x1]
        %1341 = vset.pattern.permute.xlu0 3
        %1342 = vperm.xlu0 %1341, %v1339
        %v1343 = vpop.permute.xlu0 %1342
        %v1345 = vadd.f32 %v1338, %v1343
        %1346 = vst [vmem:[%s252] sm:$0x1] %v1345
        %s1347 = sand.u32 %s142, 1
        %s1348 = scalar_lea.sflag [#allocation3], %s1347
        %s1349 = sand.u32 %s142, 1
        %s1350 = smul.addr %s1349, 32
        %s1351 = scalar_lea.vmem [#allocation2], %s1350
        %s1352 = sand.u32 %s168, 1
        %s1353 = scalar_lea.sflag [#allocation5], %s1352
        %s1354 = sand.u32 %s168, 1
        %s1355 = scalar_lea.vmem [#allocation4], %s1354
        // Predicated region
        $region41: #{tpu_custom_call.1} parent=39 // pred_check
          %p1356 = pneg %p152
        $region42: #{tpu_custom_call.1} parent=39 // pred_check_branch
          %1358 = sbr.rel (%p1356) target = $region44
        $region43: #{tpu_custom_call.1} parent=39 // pred_region
          %s1360 = ssub.s32 512, 512
          %1361 = vsyncadd %s1348, %s1360
          %s1362 = smul.addr %s24, 128
          %s1363 = scalar_lea.hbm %s5, %s1362
          %s1364 = sshll.u32 %s1351, 4
          %s1365 = int_to_ptr.vmem [resolvable:$true] %s1364
          %1370 = dma.vmem_to_hbm [thread:$0]  %s1365, 512, %s1363, %s1348, 128, 256, 8
        $region44: #{tpu_custom_call.1} parent=39 // pred_fallthru
          _
        // Predicated region
        $region45: #{tpu_custom_call.1} parent=39 // pred_check
          %p1371 = pneg %p178
        $region46: #{tpu_custom_call.1} parent=39 // pred_check_branch
          %1373 = sbr.rel (%p1371) target = $region48
        $region47: #{tpu_custom_call.1} parent=39 // pred_region
          %s1375 = ssub.s32 16, 16
          %1376 = vsyncadd %s1353, %s1375
          %s1377 = smul.addr %s24, 16
          %s1378 = scalar_lea.hbm %s6, %s1377
          %s1380 = sshll.u32 %s1355, 4
          %s1381 = int_to_ptr.vmem [resolvable:$true] %s1380
          %1383 = dma.vmem_to_hbm [thread:$0]  %s1381, 16, %s1378, %s1353
        $region48: #{tpu_custom_call.1} parent=39 // pred_fallthru
          _
      $region40: #{tpu_custom_call.1} parent=5 // pred_fallthru
        _
      %p1384 = scmp.le.s32.totalorder 2, %s19
      // Predicated region
      $region49: #{tpu_custom_call.1} parent=5 // pred_check
        %p1385 = pneg %p1384
      $region50: #{tpu_custom_call.1} parent=5 // pred_check_branch
        %1387 = sbr.rel (%p1385) target = $region52
      $region51: #{tpu_custom_call.1} parent=5 // pred_region
        %s1388 = ssub.s32 %s19, 2
        // Predicated region
        $region53: #{tpu_custom_call.1} parent=51 // pred_check
          %p1389 = pneg %p158
        $region54: #{tpu_custom_call.1} parent=51 // pred_check_branch
          %1391 = sbr.rel (%p1389) target = $region56
        $region55: #{tpu_custom_call.1} parent=51 // pred_region
          %s1392 = sand.u32 %s143, 1
          %s1393 = scalar_lea.sflag [#allocation3], %s1392
          %s1394 = sand.u32 %s143, 1
          %s1395 = smul.addr %s1394, 32
          %s1396 = scalar_lea.vmem [#allocation2], %s1395
          %1397 = dma.done %s1393, 512
        $region56: #{tpu_custom_call.1} parent=51 // pred_fallthru
          _
        // Predicated region
        $region57: #{tpu_custom_call.1} parent=51 // pred_check
          %p1398 = pneg %p184
        $region58: #{tpu_custom_call.1} parent=51 // pred_check_branch
          %1400 = sbr.rel (%p1398) target = $region60
        $region59: #{tpu_custom_call.1} parent=51 // pred_region
          %s1401 = sand.u32 %s169, 1
          %s1402 = scalar_lea.sflag [#allocation5], %s1401
          %s1403 = sand.u32 %s169, 1
          %s1404 = scalar_lea.vmem [#allocation4], %s1403
          %1405 = dma.done %s1402, 16
        $region60: #{tpu_custom_call.1} parent=51 // pred_fallthru
          _
      $region52: #{tpu_custom_call.1} parent=5 // pred_fallthru
        _
    $region6: #{tpu_custom_call.1} parent=1 // loop_footer
      %s23 = sadd.s32 1, %s19
    $region7: #{tpu_custom_call.1} parent=1 // loop_footer_branch
      %18 = sbr.rel target = $region3
    $region8: #{tpu_custom_call.1} parent=1 // loop_exit
      _
    %1406 = vsyncpa [#allocation3], 1
    %s1407 = scalar_lea.sflag [#allocation3], 1
    %1408 = vsyncpa %s1407, 1
    %1409 = vsyncpa [#allocation5], 1
    %s1410 = scalar_lea.sflag [#allocation5], 1
    %1411 = vsyncpa %s1410, 1

</llo_original>
